<compile_context>
chip_gen: v7x
topology: tpu7x:2x2x1
jax: 0.10.0
libtpu: 0.0.40
codegen_flags: <defaults>
</compile_context>

<pallas_src>
import functools

import jax
import jax.numpy as jnp
from jax.experimental import pallas as pl
from jax.experimental.pallas import tpu as pltpu

LANES = 128
# reduce path:      2 input streams x 2 buffers x 4 MiB (f32, 8192 rows) = 16 MiB
# elementwise path: 3 streams       x 2 buffers x 2 MiB (f32, 4096 rows) = 12 MiB
MAX_ROW_BLOCK_REDUCE = 8192
MAX_ROW_BLOCK_ELEM = 4096
VMEM_LIMIT_BYTES = 40 * 1024 * 1024


def _weighted_l1(x_ref, y_ref, pos_weight):
    """|sigmoid(x) - y| * (1 + y * pos_weight), computed in f32."""
    x = x_ref[...].astype(jnp.float32)
    y = y_ref[...].astype(jnp.float32)
    p = jax.nn.sigmoid(x)  # lax.logistic -> EUP transcendental slot
    return jnp.abs(p - y) * (1.0 + y * pos_weight)


def _l1w_partial_sum_kernel(x_ref, y_ref, out_ref, *, pos_weight, mask_spec):
    """Writes this block's partial sum as a (PR, LANES) f32 tile.

    mask_spec is None when every element of every block is valid; otherwise it
    is (last_block_index, valid_elems_in_last_block).  Both are static Python
    ints, so the mask path only exists when needed and the mask index is
    block-local (no global element index -> no int32 overflow for huge n).
    """
    val = _weighted_l1(x_ref, y_ref, pos_weight)
    rb = val.shape[0]
    pr = out_ref.shape[0]

    def _store(v):
        # Wide partial: rb//pr independent accumulator groups keep the VPU add
        # chain short so the reduction hides under the DMA window.
        out_ref[...] = v.reshape(rb // pr, pr, LANES).sum(axis=0)

    if mask_spec is None:
        _store(val)
    else:
        last_block, local_valid = mask_spec
        i = pl.program_id(0)

        @pl.when(i != last_block)
        def _():
            _store(val)

        @pl.when(i == last_block)
        def _():
            ridx = jax.lax.broadcasted_iota(jnp.int32, val.shape, 0)
            cidx = jax.lax.broadcasted_iota(jnp.int32, val.shape, 1)
            lidx = ridx * LANES + cidx  # block-local element index
            _store(jnp.where(lidx < local_valid, val, 0.0))


def _l1w_elem_kernel(x_ref, y_ref, out_ref, *, pos_weight):
    """Elementwise weighted L1 (reduce=False path)."""
    out_ref[...] = _weighted_l1(x_ref, y_ref, pos_weight).astype(out_ref.dtype)


def _sublane_multiple(*dtypes):
    """Sublane alignment: 8 for 4-byte, 16 for 2-byte, 32 for 1-byte dtypes."""
    m = 8
    for dt in dtypes:
        m = max(m, 8 * (4 // max(1, jnp.dtype(dt).itemsize)))
    return m


def _round_up(x, m):
    return ((x + m - 1) // m) * m


def l1_loss_w(logits, labels, pos_weight=1.0, reduce=True, max_row_block=None):
    """Pallas implementation of L1_LossW.forward."""
    assert logits.shape == labels.shape
    orig_shape = logits.shape
    n = 1
    for d in orig_shape:
        n *= d

    sub = _sublane_multiple(logits.dtype, labels.dtype)
    rows = pl.cdiv(n, LANES)

    x_flat = logits.reshape(-1)
    y_flat = labels.reshape(-1)
    if rows * LANES != n:
        # TODO(synk): truly 128-misaligned element counts still take one pad
        # copy; avoiding it entirely would need a manual-DMA tail kernel.
        pad = rows * LANES - n
        x_flat = jnp.pad(x_flat, (0, pad))
        y_flat = jnp.pad(y_flat, (0, pad))
    x2 = x_flat.reshape(rows, LANES)  # free reshape when n % 128 == 0
    y2 = y_flat.reshape(rows, LANES)

    cap = max_row_block if max_row_block is not None else (
        MAX_ROW_BLOCK_REDUCE if reduce else MAX_ROW_BLOCK_ELEM)
    row_block = min(_round_up(rows, sub), _round_up(cap, sub))
    num_blocks = pl.cdiv(rows, row_block)
    block_elems = row_block * LANES

    # Static mask decision: only the last block can contain invalid elements
    # (partial tile at the array edge and/or the <128-element pad region).
    if n == num_blocks * block_elems:
        mask_spec = None
    else:
        mask_spec = (num_blocks - 1, n - (num_blocks - 1) * block_elems)

    grid = (num_blocks,)
    in_specs = [
        pl.BlockSpec((row_block, LANES), lambda i: (i, 0)),
        pl.BlockSpec((row_block, LANES), lambda i: (i, 0)),
    ]
    compiler_params = pltpu.CompilerParams(
        dimension_semantics=("parallel",),
        vmem_limit_bytes=VMEM_LIMIT_BYTES,
    )

    if reduce:
        pr = 8
        for cand in (64, 32, 16, 8):
            if row_block % cand == 0:
                pr = cand
                break
        kernel = functools.partial(
            _l1w_partial_sum_kernel,
            pos_weight=float(pos_weight),
            mask_spec=mask_spec,
        )
        partials = pl.pallas_call(
            kernel,
            out_shape=jax.ShapeDtypeStruct((num_blocks * pr, LANES),
                                           jnp.float32),
            grid_spec=pltpu.PrefetchScalarGridSpec(
                num_scalar_prefetch=0,
                grid=grid,
                in_specs=in_specs,
                out_specs=pl.BlockSpec((pr, LANES), lambda i: (i, 0)),
            ),
            compiler_params=compiler_params,
        )(x2, y2)
        # Tiny final reduce over the per-block partials in the wrapper.
        return (jnp.sum(partials) / jnp.float32(n)).astype(jnp.float32)

    # reduce=False: elementwise, dtype-preserving.
    out_dtype = jnp.result_type(logits.dtype, labels.dtype)
    kernel = functools.partial(_l1w_elem_kernel, pos_weight=float(pos_weight))
    out2 = pl.pallas_call(
        kernel,
        out_shape=jax.ShapeDtypeStruct((rows, LANES), out_dtype),
        grid_spec=pltpu.PrefetchScalarGridSpec(
            num_scalar_prefetch=0,
            grid=grid,
            in_specs=in_specs,
            out_specs=pl.BlockSpec((row_block, LANES), lambda i: (i, 0)),
        ),
        compiler_params=compiler_params,
    )(x2, y2)
    out_flat = out2.reshape(-1)
    if rows * LANES != n:
        out_flat = out_flat[:n]
    return out_flat.reshape(orig_shape)


def _reference(logits, labels, pos_weight=1.0, reduce=True):
    lf = logits.astype(jnp.float32)
    yf = labels.astype(jnp.float32)
    out = jnp.abs(jax.nn.sigmoid(lf) - yf) * (1.0 + yf * pos_weight)
    return jnp.mean(out) if reduce else out


if __name__ == "__main__":
    key = jax.random.PRNGKey(0)
    keys = jax.random.split(key, 8)
    pos_weight = 2.0

    # 1) Aligned NCHW-like shape (n is a multiple of 128): zero-copy fast path.
    shape = (2, 4, 16, 16)
    lg = jax.random.normal(keys[0], shape, dtype=jnp.float32)
    lb = (jax.random.uniform(keys[1], shape) > 0.7).astype(jnp.float32)

    out = jax.block_until_ready(l1_loss_w(lg, lb, pos_weight, reduce=True))
    ref = _reference(lg, lb, pos_weight, reduce=True)
    assert jnp.allclose(out, ref, atol=1e-5, rtol=1e-5), (out, ref)

    out_e = jax.block_until_ready(l1_loss_w(lg, lb, pos_weight, reduce=False))
    ref_e = _reference(lg, lb, pos_weight, reduce=False)
    assert out_e.dtype == lg.dtype
    assert jnp.allclose(out_e, ref_e, atol=1e-5, rtol=1e-5)

    # 2) n multiple of 128 but NOT a block multiple: zero-copy masked partial
    #    block + multi-block grid (small max_row_block override for coverage).
    shape2 = (3, 5, 128)  # 15 rows of 128
    lg2 = jax.random.normal(keys[2], shape2, dtype=jnp.float32)
    lb2 = (jax.random.uniform(keys[3], shape2) > 0.7).astype(jnp.float32)
    out2 = jax.block_until_ready(
        l1_loss_w(lg2, lb2, pos_weight, reduce=True, max_row_block=8))
    ref2 = _reference(lg2, lb2, pos_weight, reduce=True)
    assert jnp.allclose(out2, ref2, atol=1e-5, rtol=1e-5), (out2, ref2)
    out2_e = jax.block_until_ready(
        l1_loss_w(lg2, lb2, pos_weight, reduce=False, max_row_block=8))
    ref2_e = _reference(lg2, lb2, pos_weight, reduce=False)
    assert jnp.allclose(out2_e, ref2_e, atol=1e-5, rtol=1e-5)

    # 3) n not a multiple of 128: documented pad-fallback path.
    shape3 = (2, 3, 7, 5)
    lg3 = jax.random.normal(keys[4], shape3, dtype=jnp.float32)
    lb3 = (jax.random.uniform(keys[5], shape3) > 0.7).astype(jnp.float32)
    out3 = jax.block_until_ready(l1_loss_w(lg3, lb3, pos_weight, reduce=True))
    ref3 = _reference(lg3, lb3, pos_weight, reduce=True)
    assert jnp.allclose(out3, ref3, atol=1e-5, rtol=1e-5), (out3, ref3)
    out3_e = jax.block_until_ready(l1_loss_w(lg3, lb3, pos_weight, reduce=False))
    ref3_e = _reference(lg3, lb3, pos_weight, reduce=False)
    assert jnp.allclose(out3_e, ref3_e, atol=1e-5, rtol=1e-5)

    # 4) bf16 inputs: exercises the 16-row sublane-packing alignment.
    lg4 = jax.random.normal(keys[6], shape, dtype=jnp.bfloat16)
    lb4 = (jax.random.uniform(keys[7], shape) > 0.7).astype(jnp.bfloat16)
    out4 = jax.block_until_ready(l1_loss_w(lg4, lb4, pos_weight, reduce=True))
    ref4 = _reference(lg4, lb4, pos_weight, reduce=True)
    assert jnp.allclose(out4, ref4, atol=1e-4, rtol=1e-4), (out4, ref4)

    print("KERNEL_OK")
</pallas_src>

<mosaic_0001>
module attributes {stable_mosaic.version = 11 : i64} {
  func.func @_l1w_partial_sum_kernel(%arg0: i32, %arg1: memref<16x128xf32, #tpu.memory_space<vmem>>, %arg2: memref<16x128xf32, #tpu.memory_space<vmem>>, %arg3: memref<16x128xf32, #tpu.memory_space<vmem>>) attributes {dimension_semantics = [#tpu.dimension_semantics<parallel>], iteration_bounds = array<i64: 1>, scalar_prefetch = 0 : i64, scratch_operands = 0 : i64, tpu.core_type = #tpu.core_type<tc>, window_params = [{transform_indices = @transform_0, window_bounds = array<i64: 16, 128>}, {transform_indices = @transform_1, window_bounds = array<i64: 16, 128>}, {transform_indices = @transform_2, window_bounds = array<i64: 16, 128>}]} {
    %c0 = arith.constant 0 : index
    %c0_0 = arith.constant 0 : index
    %0 = vector.load %arg1[%c0, %c0_0] : memref<16x128xf32, #tpu.memory_space<vmem>>, vector<16x128xf32>
    %c0_1 = arith.constant 0 : index
    %c0_2 = arith.constant 0 : index
    %1 = vector.load %arg2[%c0_1, %c0_2] : memref<16x128xf32, #tpu.memory_space<vmem>>, vector<16x128xf32>
    %2 = arith.negf %0 : vector<16x128xf32>
    %3 = math.exp %2 : vector<16x128xf32>
    %cst = arith.constant 1.000000e+00 : f32
    %4 = vector.broadcast %cst : f32 to vector<16x128xf32>
    %5 = arith.addf %4, %3 : vector<16x128xf32>
    %6 = arith.divf %4, %5 : vector<16x128xf32>
    %7 = arith.subf %6, %1 : vector<16x128xf32>
    %8 = math.absf %7 : vector<16x128xf32>
    %cst_3 = arith.constant 2.000000e+00 : f32
    %9 = vector.broadcast %cst_3 : f32 to vector<16x128xf32>
    %10 = arith.mulf %1, %9 : vector<16x128xf32>
    %cst_4 = arith.constant 1.000000e+00 : f32
    %11 = vector.broadcast %cst_4 : f32 to vector<16x128xf32>
    %12 = arith.addf %11, %10 : vector<16x128xf32>
    %13 = arith.mulf %8, %12 : vector<16x128xf32>
    %14 = vector.shape_cast %13 : vector<16x128xf32> to vector<1x16x128xf32>
    %cst_5 = arith.constant dense<0.000000e+00> : vector<16x128xf32>
    %15 = vector.multi_reduction <add>, %14, %cst_5 [0] : vector<1x16x128xf32> to vector<16x128xf32>
    %c0_6 = arith.constant 0 : index
    %c0_7 = arith.constant 0 : index
    %16 = vector.load %arg3[%c0_6, %c0_7] : memref<16x128xf32, #tpu.memory_space<vmem>>, vector<16x128xf32>
    tpu.vector_store %arg3[%c0_6, %c0_7], %15 {strides = array<i32>} : memref<16x128xf32, #tpu.memory_space<vmem>>, vector<16x128xf32>,
    return
  }
  func.func @transform_0(%arg0: i32) -> (i32, i32) {
    %c0_i32 = arith.constant 0 : i32
    %c0_i32_0 = arith.constant 0 : i32
    return %arg0, %c0_i32 : i32, i32
  }
  func.func @transform_1(%arg0: i32) -> (i32, i32) {
    %c0_i32 = arith.constant 0 : i32
    %c0_i32_0 = arith.constant 0 : i32
    return %arg0, %c0_i32 : i32, i32
  }
  func.func @transform_2(%arg0: i32) -> (i32, i32) {
    %c0_i32 = arith.constant 0 : i32
    %c0_i32_0 = arith.constant 0 : i32
    return %arg0, %c0_i32 : i32, i32
  }
}

</mosaic_0001>

<llo_original>
// kernel: tpu_custom_call.1
$region0: #{tpu_custom_call.1}
  #allocation0 [shape = 'u32[]', space=smem, size = 0x4, offset = 0x4, fixed_abs, tag = 'smem constant byte address 0x4 - core index']
  #allocation1 [shape = 'u32[144,128]{1,0:T(1,128)}', space=vmem, size = 0x12000, scoped, tag = 'internal scratch']
  %s0 = inlined_call_operand.hbm [shape: f32[16,128], index: 0, kind: input, shape index: {}]
  %s1 = inlined_call_operand.hbm [shape: f32[16,128], index: 1, kind: input, shape index: {}]
  %s2 = inlined_call_operand.hbm [shape: f32[16,128], index: 2, kind: output, shape index: {}]
  %s3 = sld [smem:[#allocation0]]
  $region26: #{tpu_custom_call.1} parent=0
    _
  %s5 = ssub.s32 1, %s3
  %s6 = scalar_select 0, %s5, %s3
  $region1: #{tpu_custom_call.1} parent=0
    #allocation2 [shape = 'u8[8192]{0}', space=vmem, size = 0x2000, scoped, tag = 'input window, operand 0, single buffered']
    #allocation3 [shape = 's32[1]{0}', space=sflag, size = 0x4, scoped, tag = 'scoped memory for tpu_custom_call.1']
    #allocation4 [shape = 's32[1]{0}', space=sflag, size = 0x4, scoped, tag = 'scoped memory for tpu_custom_call.1']
    #allocation5 [shape = 'u8[8192]{0}', space=vmem, size = 0x2000, scoped, tag = 'input window, operand 1, single buffered']
    #allocation6 [shape = 's32[1]{0}', space=sflag, size = 0x4, scoped, tag = 'scoped memory for tpu_custom_call.1']
    #allocation7 [shape = 'u8[8192]{0}', space=vmem, size = 0x2000, scoped, tag = 'output window, operand 0, single buffered']
    %7 = vsyncpa [#allocation3], 0
    %8 = vsyncpa [#allocation6], 0
    %9 = vsyncpa [#allocation4], 0
    // Predicated region
    $region2: #{tpu_custom_call.1} parent=1 // pred_check
      _
    $region3: #{tpu_custom_call.1} parent=1 // pred_check_branch
      %11 = sbr.rel (0) target = $region5
    $region4: #{tpu_custom_call.1} parent=1 // pred_region
      %s13 = ssub.s32 256, 256
      %14 = vsyncadd [#allocation3], %s13
      %s15 = sshll.u32 [#allocation2], 4
      %s16 = int_to_ptr.vmem [resolvable:$true] %s15
      %21 = dma.hbm_to_vmem [thread:$0]  %s0, 256, %s16, [#allocation3], 128, 128, 8
    $region5: #{tpu_custom_call.1} parent=1 // pred_fallthru
      _
    // Predicated region
    $region6: #{tpu_custom_call.1} parent=1 // pred_check
      _
    $region7: #{tpu_custom_call.1} parent=1 // pred_check_branch
      %23 = sbr.rel (0) target = $region9
    $region8: #{tpu_custom_call.1} parent=1 // pred_region
      %s25 = ssub.s32 256, 256
      %26 = vsyncadd [#allocation6], %s25
      %s27 = sshll.u32 [#allocation5], 4
      %s28 = int_to_ptr.vmem [resolvable:$true] %s27
      %33 = dma.hbm_to_vmem [thread:$0]  %s1, 256, %s28, [#allocation6], 128, 128, 8
    $region9: #{tpu_custom_call.1} parent=1 // pred_fallthru
      _
    // Predicated region
    $region10: #{tpu_custom_call.1} parent=1 // pred_check
      _
    $region11: #{tpu_custom_call.1} parent=1 // pred_check_branch
      %35 = sbr.rel (0) target = $region13
    $region12: #{tpu_custom_call.1} parent=1 // pred_region
      %36 = dma.done [#allocation3], 256
    $region13: #{tpu_custom_call.1} parent=1 // pred_fallthru
      _
    // Predicated region
    $region14: #{tpu_custom_call.1} parent=1 // pred_check
      _
    $region15: #{tpu_custom_call.1} parent=1 // pred_check_branch
      %38 = sbr.rel (0) target = $region17
    $region16: #{tpu_custom_call.1} parent=1 // pred_region
      %39 = dma.done [#allocation6], 256
    $region17: #{tpu_custom_call.1} parent=1 // pred_fallthru
      _
    %v40 = vld [vmem:[#allocation2] sm:$0xff]
    %v41 = vld [vmem:[#allocation2 + $0x8] sm:$0xff]
    %v42 = vld [vmem:[#allocation5] sm:$0xff]
    %v43 = vld [vmem:[#allocation5 + $0x8] sm:$0xff]
    %v44 = vxor.u32 %v40, 2147483648
    %v45 = vxor.u32 %v41, 2147483648
    %v46 = vmul.f32 %v44, 1.442695
    %v47 = vpow.pop %v46
    %v48 = vmul.f32 %v45, 1.442695
    %v49 = vpow.pop %v48
    %v50 = vadd.f32 %v47, 1.0
    %v51 = vadd.f32 %v49, 1.0
    %v52 = vrcp.pop %v50
    %v53 = vmul.f32 1.0, %v52
    %v54 = vrcp.pop %v51
    %v55 = vmul.f32 1.0, %v54
    %v56 = vsub.f32 %v53, %v42
    %v57 = vsub.f32 %v55, %v43
    %v58 = vand.u32 2147483647, %v56
    %v59 = vand.u32 2147483647, %v57
    %v60 = vmul.f32 %v42, 2.0
    %v61 = vmul.f32 %v43, 2.0
    %v62 = vadd.f32 %v60, 1.0
    %v63 = vadd.f32 %v61, 1.0
    %v64 = vmul.f32 %v58, %v62
    %v65 = vmul.f32 %v59, %v63
    %v66 = vadd.f32 %v64, 0.0
    %v67 = vadd.f32 %v65, 0.0
    %68 = vst [vmem:[#allocation7] sm:$0xff] %v66
    %69 = vst [vmem:[#allocation7 + $0x8] sm:$0xff] %v67
    // Predicated region
    $region18: #{tpu_custom_call.1} parent=1 // pred_check
      _
    $region19: #{tpu_custom_call.1} parent=1 // pred_check_branch
      %71 = sbr.rel (0) target = $region21
    $region20: #{tpu_custom_call.1} parent=1 // pred_region
      %s73 = ssub.s32 256, 256
      %74 = vsyncadd [#allocation4], %s73
      %s75 = sshll.u32 [#allocation7], 4
      %s76 = int_to_ptr.vmem [resolvable:$true] %s75
      %81 = dma.vmem_to_hbm [thread:$0]  %s76, 256, %s2, [#allocation4], 128, 128, 8
    $region21: #{tpu_custom_call.1} parent=1 // pred_fallthru
      _
    // Predicated region
    $region22: #{tpu_custom_call.1} parent=1 // pred_check
      _
    $region23: #{tpu_custom_call.1} parent=1 // pred_check_branch
      %83 = sbr.rel (0) target = $region25
    $region24: #{tpu_custom_call.1} parent=1 // pred_region
      %84 = dma.done [#allocation4], 256
    $region25: #{tpu_custom_call.1} parent=1 // pred_fallthru
      _
    %85 = vsyncpa [#allocation3], 1
    %86 = vsyncpa [#allocation6], 1
    %87 = vsyncpa [#allocation4], 1

</llo_original>
